<compile_context>
chip_gen: v7x
topology: tpu7x:2x2x1
jax: 0.10.0
libtpu: 0.0.40
codegen_flags: <defaults>
</compile_context>

<pallas_src>
import functools

import jax
import jax.numpy as jnp
from jax.experimental import pallas as pl
from jax.experimental.pallas import tpu as pltpu


def _round_up(x: int, m: int) -> int:
    return (x + m - 1) // m * m


def node_predictor_kernel(x_ref, w1_ref, b1_ref, w2_ref, b2_ref, o_ref):
    # First linear: x @ W1 + b1 (MXU matmul, f32 accumulate).
    h = jnp.dot(x_ref[...], w1_ref[...], preferred_element_type=jnp.float32)
    h = h + b1_ref[...].astype(jnp.float32)   # broadcast (1, in_dim) over rows
    # ReLU on the VPU.
    h = jnp.maximum(h, 0.0)
    # Second linear: h @ W2 + b2.  For f32 weights keep everything in f32
    # (matches the reference); for bf16 weights feed the MXU its native bf16
    # operands (accumulation stays f32) instead of promoting W2 to f32.
    w2 = w2_ref[...]
    if w2.dtype != jnp.float32:
        h = h.astype(w2.dtype)
    out = jnp.dot(h, w2, preferred_element_type=jnp.float32)
    out = out + b2_ref[...].astype(jnp.float32)
    o_ref[...] = out.astype(o_ref.dtype)


def _tpu_budgets():
    """Returns (vmem_budget_bytes, num_tensorcores_per_chip), conservatively."""
    vmem_cap = 64 * 1024 * 1024   # assume worst case (v7x) if undetectable
    num_tc = 1
    try:
        info = pltpu.get_tpu_info()
        cap = getattr(info, "vmem_capacity_bytes", None)
        if cap:
            vmem_cap = int(cap)
    except Exception:
        pass
    try:
        kind = jax.devices()[0].device_kind.lower()
        if "v7" in kind or "7x" in kind:
            num_tc = 2            # v7x: two TensorCores per chip
    except Exception:
        pass
    # ~25% headroom for Mosaic internal scratch / output DMA / MRB staging.
    budget = max(16 * 1024 * 1024, int(0.75 * vmem_cap))
    return budget, num_tc


def node_predictor(node_embed, w1, b1, w2, b2, *, tile_n=None):
    """Fused Linear -> ReLU -> Linear.

    node_embed: [N, in_dim]; w1: [in_dim, in_dim]; b1: [in_dim];
    w2: [in_dim, out_dim]; b2: [out_dim].  Weights already transposed to
    [in_features, out_features].
    """
    N, in_dim = node_embed.shape
    out_dim = w2.shape[1]
    x_itemsize = jnp.dtype(node_embed.dtype).itemsize
    w_itemsize = jnp.dtype(w1.dtype).itemsize

    # ---- Lane-dense output ---------------------------------------------------
    # Pad the output feature dim (and W2/b2) up to a multiple of 128 lanes so
    # every output store is an unmasked full-lane vst; slice back afterwards.
    out_lanes = _round_up(out_dim, 128)
    if out_lanes != out_dim:
        w2 = jnp.pad(w2, ((0, 0), (0, out_lanes - out_dim)))
        b2 = jnp.pad(b2, ((0, out_lanes - out_dim),))
    b1_row = b1.reshape(1, in_dim)
    b2_row = b2.reshape(1, out_lanes)

    vmem_budget, num_tc = _tpu_budgets()

    # ---- Layout-padded VMEM accounting ((sublane, 128)-tile granularity) -----
    lane = 128
    sub_x = max(8, 32 // x_itemsize)     # sublane multiple for activation dtype
    sub_w = max(8, 32 // w_itemsize)
    in_lanes = _round_up(in_dim, lane)
    weight_bytes = (_round_up(in_dim, sub_w) * in_lanes        # W1
                    + _round_up(in_dim, sub_w) * out_lanes     # W2
                    + sub_w * in_lanes + sub_w * out_lanes     # b1, b2
                    ) * w_itemsize

    def step_bytes(t):
        t = _round_up(t, sub_x)
        return (2 * t * in_lanes * x_itemsize      # double-buffered x tile
                + 2 * t * out_lanes * x_itemsize   # double-buffered out tile
                + weight_bytes)                    # single-buffered weights/biases

    # ---- Row-tile selection ---------------------------------------------------
    # v5e/v6e (1 TensorCore): a single grid step whenever it fits VMEM — the
    # grid is a serial loop there and extra steps are pure ~0.35us/step overhead.
    # v7x (2 TensorCores): >= 2 (even) grid steps so the "parallel" axis shards
    # rows across both cores.
    if tile_n is None:
        if num_tc >= 2 and N > 8:
            tile_n = _round_up(pl.cdiv(N, 2), 8)
        else:
            tile_n = _round_up(max(N, 1), 8)
        while tile_n > 8 and step_bytes(tile_n) > vmem_budget:
            tile_n = _round_up(pl.cdiv(tile_n, 2), 8)
        steps = pl.cdiv(N, tile_n)
        if num_tc >= 2 and steps > 1 and steps % 2 == 1:
            tile_n = max(8, _round_up(pl.cdiv(N, steps + 1), 8))
    else:
        tile_n = max(8, _round_up(tile_n, 8))
    # TODO(synk): for in_dim >~ 2048 (f32 W1 >= 16 MiB) add a K-tiling
    # ("arbitrary") reduction grid axis over in_dim with an f32 VMEM accumulator
    # instead of keeping all of W1/W2 resident — matters first on v7x (64 MiB).

    # Ragged tail handled by Pallas partial-block masking (rows are independent
    # and out-of-bounds rows of the last block are never written back).
    grid = (pl.cdiv(N, tile_n),)

    vmem_limit_bytes = int(max(4 << 20,
                               min(vmem_budget, step_bytes(tile_n) + (2 << 20))))

    cost = pl.CostEstimate(
        flops=2 * N * in_dim * (in_dim + out_dim),
        transcendentals=0,
        bytes_accessed=(N * in_dim + N * out_lanes) * x_itemsize
        + (in_dim * in_dim + in_dim * out_lanes + in_dim + out_lanes) * w_itemsize,
    )

    # Grid-invariant operands (constant index_map) only need one VMEM buffer.
    invariant = functools.partial(pl.BlockSpec, pipeline_mode=pl.Buffered(1))

    out = pl.pallas_call(
        node_predictor_kernel,
        out_shape=jax.ShapeDtypeStruct((N, out_lanes), node_embed.dtype),
        grid_spec=pltpu.PrefetchScalarGridSpec(
            num_scalar_prefetch=0,
            grid=grid,
            in_specs=[
                pl.BlockSpec((tile_n, in_dim), lambda i: (i, 0)),   # x row tile
                invariant((in_dim, in_dim), lambda i: (0, 0)),      # W1 (full)
                invariant((1, in_dim), lambda i: (0, 0)),           # b1
                invariant((in_dim, out_lanes), lambda i: (0, 0)),   # W2 (padded)
                invariant((1, out_lanes), lambda i: (0, 0)),        # b2 (padded)
            ],
            out_specs=pl.BlockSpec((tile_n, out_lanes), lambda i: (i, 0)),
        ),
        compiler_params=pltpu.CompilerParams(
            dimension_semantics=("parallel",),
            vmem_limit_bytes=vmem_limit_bytes,
        ),
        cost_estimate=cost,
    )(node_embed, w1, b1_row, w2, b2_row)

    return out[:, :out_dim] if out_lanes != out_dim else out


if __name__ == "__main__":
    key = jax.random.PRNGKey(0)
    k_x, k_w1, k_b1, k_w2, k_b2 = jax.random.split(key, 5)

    N = 256          # number of nodes
    in_dim = 32      # node embedding dim
    out_dim = 16     # prediction dim

    # Deterministic synthetic parameters (PyTorch Linear shapes: W [out, in], b [out]).
    x = jax.random.normal(k_x, (N, in_dim), dtype=jnp.float32)
    w1_pt = jax.random.normal(k_w1, (in_dim, in_dim), dtype=jnp.float32) * 0.1
    b1 = jax.random.normal(k_b1, (in_dim,), dtype=jnp.float32) * 0.1
    w2_pt = jax.random.normal(k_w2, (out_dim, in_dim), dtype=jnp.float32) * 0.1
    b2 = jax.random.normal(k_b2, (out_dim,), dtype=jnp.float32) * 0.1

    # Transpose weights to [in, out] for the kernel's row-major matmuls.
    w1 = w1_pt.T
    w2 = w2_pt.T

    out = jax.block_until_ready(node_predictor(x, w1, b1, w2, b2))
    ref = jnp.maximum(x @ w1 + b1, 0.0) @ w2 + b2
    assert out.shape == (N, out_dim)
    assert jnp.allclose(out, ref, atol=1e-5, rtol=1e-5), "mismatch vs reference"

    # Ragged node count (exercises partial-block masking on the row axis).
    n2 = 200
    out2 = jax.block_until_ready(node_predictor(x[:n2], w1, b1, w2, b2))
    ref2 = jnp.maximum(x[:n2] @ w1 + b1, 0.0) @ w2 + b2
    assert out2.shape == (n2, out_dim)
    assert jnp.allclose(out2, ref2, atol=1e-5, rtol=1e-5), "mismatch (ragged N)"

    # Non-divisible row count to force a genuinely partial last block.
    n3 = 250
    out3 = jax.block_until_ready(node_predictor(x[:n3], w1, b1, w2, b2, tile_n=96))
    ref3 = jnp.maximum(x[:n3] @ w1 + b1, 0.0) @ w2 + b2
    assert out3.shape == (n3, out_dim)
    assert jnp.allclose(out3, ref3, atol=1e-5, rtol=1e-5), "mismatch (partial block)"

    print("KERNEL_OK")
</pallas_src>

<mosaic_0001>
module attributes {stable_mosaic.version = 11 : i64} {
  func.func @node_predictor_kernel(%arg0: i32, %arg1: memref<256x32xf32, #tpu.memory_space<vmem>>, %arg2: memref<32x32xf32, #tpu.memory_space<vmem>>, %arg3: memref<1x32xf32, #tpu.memory_space<vmem>>, %arg4: memref<32x128xf32, #tpu.memory_space<vmem>>, %arg5: memref<1x128xf32, #tpu.memory_space<vmem>>, %arg6: memref<256x128xf32, #tpu.memory_space<vmem>>) attributes {dimension_semantics = [#tpu.dimension_semantics<parallel>], iteration_bounds = array<i64: 1>, scalar_prefetch = 0 : i64, scratch_operands = 0 : i64, tpu.core_type = #tpu.core_type<tc>, window_params = [{transform_indices = @transform_0, window_bounds = array<i64: 256, 32>}, {pipeline_mode = #tpu.pipeline_mode<synchronous>, transform_indices = @transform_1, window_bounds = array<i64: 32, 32>}, {pipeline_mode = #tpu.pipeline_mode<synchronous>, transform_indices = @transform_2, window_bounds = array<i64: 1, 32>}, {pipeline_mode = #tpu.pipeline_mode<synchronous>, transform_indices = @transform_3, window_bounds = array<i64: 32, 128>}, {pipeline_mode = #tpu.pipeline_mode<synchronous>, transform_indices = @transform_4, window_bounds = array<i64: 1, 128>}, {transform_indices = @transform_5, window_bounds = array<i64: 256, 128>}]} {
    %c0 = arith.constant 0 : index
    %c0_0 = arith.constant 0 : index
    %0 = vector.load %arg1[%c0, %c0_0] : memref<256x32xf32, #tpu.memory_space<vmem>>, vector<256x32xf32>
    %c0_1 = arith.constant 0 : index
    %c0_2 = arith.constant 0 : index
    %1 = vector.load %arg2[%c0_1, %c0_2] : memref<32x32xf32, #tpu.memory_space<vmem>>, vector<32x32xf32>
    %cst = arith.constant dense<0.000000e+00> : vector<256x32xf32>
    %2 = tpu.matmul %0, %1, %cst {dimension_numbers = #tpu.dot_dimension_numbers<[1], [0], [0], [1], [0, 0, 1, 1], [], []>} : vector<256x32xf32>, vector<32x32xf32>, vector<256x32xf32> -> vector<256x32xf32>
    %c0_3 = arith.constant 0 : index
    %c0_4 = arith.constant 0 : index
    %3 = vector.load %arg3[%c0_3, %c0_4] : memref<1x32xf32, #tpu.memory_space<vmem>>, vector<1x32xf32>
    %4 = vector.broadcast %3 : vector<1x32xf32> to vector<256x32xf32>
    %5 = arith.addf %2, %4 : vector<256x32xf32>
    %cst_5 = arith.constant 0.000000e+00 : f32
    %6 = vector.broadcast %cst_5 : f32 to vector<256x32xf32>
    %7 = arith.maximumf %5, %6 : vector<256x32xf32>
    %c0_6 = arith.constant 0 : index
    %c0_7 = arith.constant 0 : index
    %8 = vector.load %arg4[%c0_6, %c0_7] : memref<32x128xf32, #tpu.memory_space<vmem>>, vector<32x128xf32>
    %cst_8 = arith.constant dense<0.000000e+00> : vector<256x128xf32>
    %9 = tpu.matmul %7, %8, %cst_8 {dimension_numbers = #tpu.dot_dimension_numbers<[1], [0], [0], [1], [0, 0, 1, 1], [], []>} : vector<256x32xf32>, vector<32x128xf32>, vector<256x128xf32> -> vector<256x128xf32>
    %c0_9 = arith.constant 0 : index
    %c0_10 = arith.constant 0 : index
    %10 = vector.load %arg5[%c0_9, %c0_10] : memref<1x128xf32, #tpu.memory_space<vmem>>, vector<1x128xf32>
    %11 = vector.broadcast %10 : vector<1x128xf32> to vector<256x128xf32>
    %12 = arith.addf %9, %11 : vector<256x128xf32>
    %c0_11 = arith.constant 0 : index
    %c0_12 = arith.constant 0 : index
    %13 = vector.load %arg6[%c0_11, %c0_12] : memref<256x128xf32, #tpu.memory_space<vmem>>, vector<256x128xf32>
    tpu.vector_store %arg6[%c0_11, %c0_12], %12 {strides = array<i32>} : memref<256x128xf32, #tpu.memory_space<vmem>>, vector<256x128xf32>,
    return
  }
  func.func @transform_0(%arg0: i32) -> (i32, i32) {
    %c0_i32 = arith.constant 0 : i32
    %c0_i32_0 = arith.constant 0 : i32
    return %arg0, %c0_i32 : i32, i32
  }
  func.func @transform_1(%arg0: i32) -> (i32, i32) {
    %c0_i32 = arith.constant 0 : i32
    %c0_i32_0 = arith.constant 0 : i32
    %c0_i32_1 = arith.constant 0 : i32
    return %c0_i32, %c0_i32_0 : i32, i32
  }
  func.func @transform_2(%arg0: i32) -> (i32, i32) {
    %c0_i32 = arith.constant 0 : i32
    %c0_i32_0 = arith.constant 0 : i32
    %c0_i32_1 = arith.constant 0 : i32
    return %c0_i32, %c0_i32_0 : i32, i32
  }
  func.func @transform_3(%arg0: i32) -> (i32, i32) {
    %c0_i32 = arith.constant 0 : i32
    %c0_i32_0 = arith.constant 0 : i32
    %c0_i32_1 = arith.constant 0 : i32
    return %c0_i32, %c0_i32_0 : i32, i32
  }
  func.func @transform_4(%arg0: i32) -> (i32, i32) {
    %c0_i32 = arith.constant 0 : i32
    %c0_i32_0 = arith.constant 0 : i32
    %c0_i32_1 = arith.constant 0 : i32
    return %c0_i32, %c0_i32_0 : i32, i32
  }
  func.func @transform_5(%arg0: i32) -> (i32, i32) {
    %c0_i32 = arith.constant 0 : i32
    %c0_i32_0 = arith.constant 0 : i32
    return %arg0, %c0_i32 : i32, i32
  }
}

</mosaic_0001>

<llo_original>
// kernel: tpu_custom_call.1
$region0: #{tpu_custom_call.1}
  #allocation0 [shape = 'u32[]', space=smem, size = 0x4, offset = 0x4, fixed_abs, tag = 'smem constant byte address 0x4 - core index']
  #allocation1 [shape = 'u32[144,128]{1,0:T(1,128)}', space=vmem, size = 0x12000, scoped, tag = 'internal scratch']
  %s0 = inlined_call_operand.vmem [shape: f32[256,32], index: 0, kind: input, shape index: {}]
  %s1 = inlined_call_operand.vmem [shape: f32[32,32], index: 1, kind: input, shape index: {}]
  %s2 = inlined_call_operand.vmem [shape: f32[1,32], index: 2, kind: input, shape index: {}]
  %s3 = inlined_call_operand.vmem [shape: f32[32,128], index: 3, kind: input, shape index: {}]
  %s4 = inlined_call_operand.vmem [shape: f32[1,128], index: 4, kind: input, shape index: {}]
  %s5 = inlined_call_operand.hbm [shape: f32[256,128], index: 5, kind: output, shape index: {}]
  %s6 = sld [smem:[#allocation0]]
  $region30: #{tpu_custom_call.1} parent=0
    _
  %s8 = ssub.s32 1, %s6
  %s9 = scalar_select 0, %s8, %s6
  $region1: #{tpu_custom_call.1} parent=0
    #allocation2 [shape = 'u8[131072]{0}', space=vmem, size = 0x20000, scoped, tag = 'output window, operand 0, single buffered']
    #allocation3 [shape = 's32[1]{0}', space=sflag, size = 0x4, scoped, tag = 'scoped memory for tpu_custom_call.1']
    %10 = vsyncpa [#allocation3], 0
    // Predicated region
    $region2: #{tpu_custom_call.1} parent=1 // pred_check
      _
    $region3: #{tpu_custom_call.1} parent=1 // pred_check_branch
      %12 = sbr.rel (0) target = $region5
    $region4: #{tpu_custom_call.1} parent=1 // pred_region
      _
    $region5: #{tpu_custom_call.1} parent=1 // pred_fallthru
      _
    // Predicated region
    $region6: #{tpu_custom_call.1} parent=1 // pred_check
      _
    $region7: #{tpu_custom_call.1} parent=1 // pred_check_branch
      %14 = sbr.rel (0) target = $region9
    $region8: #{tpu_custom_call.1} parent=1 // pred_region
      _
    $region9: #{tpu_custom_call.1} parent=1 // pred_fallthru
      _
    // Predicated region
    $region10: #{tpu_custom_call.1} parent=1 // pred_check
      _
    $region11: #{tpu_custom_call.1} parent=1 // pred_check_branch
      %16 = sbr.rel (0) target = $region13
    $region12: #{tpu_custom_call.1} parent=1 // pred_region
      _
    $region13: #{tpu_custom_call.1} parent=1 // pred_fallthru
      _
    // Predicated region
    $region14: #{tpu_custom_call.1} parent=1 // pred_check
      _
    $region15: #{tpu_custom_call.1} parent=1 // pred_check_branch
      %18 = sbr.rel (0) target = $region17
    $region16: #{tpu_custom_call.1} parent=1 // pred_region
      _
    $region17: #{tpu_custom_call.1} parent=1 // pred_fallthru
      _
    // Predicated region
    $region18: #{tpu_custom_call.1} parent=1 // pred_check
      _
    $region19: #{tpu_custom_call.1} parent=1 // pred_check_branch
      %20 = sbr.rel (0) target = $region21
    $region20: #{tpu_custom_call.1} parent=1 // pred_region
      _
    $region21: #{tpu_custom_call.1} parent=1 // pred_fallthru
      _
    %v21 = vld [vmem:[%s0] sm:$0xff]
    %v22 = vld [vmem:[%s0 + $0x8] sm:$0xff]
    %v23 = vld [vmem:[%s0 + $0x10] sm:$0xff]
    %v24 = vld [vmem:[%s0 + $0x18] sm:$0xff]
    %v25 = vld [vmem:[%s0 + $0x20] sm:$0xff]
    %v26 = vld [vmem:[%s0 + $0x28] sm:$0xff]
    %v27 = vld [vmem:[%s0 + $0x30] sm:$0xff]
    %v28 = vld [vmem:[%s0 + $0x38] sm:$0xff]
    %v29 = vld [vmem:[%s0 + $0x40] sm:$0xff]
    %v30 = vld [vmem:[%s0 + $0x48] sm:$0xff]
    %v31 = vld [vmem:[%s0 + $0x50] sm:$0xff]
    %v32 = vld [vmem:[%s0 + $0x58] sm:$0xff]
    %v33 = vld [vmem:[%s0 + $0x60] sm:$0xff]
    %v34 = vld [vmem:[%s0 + $0x68] sm:$0xff]
    %v35 = vld [vmem:[%s0 + $0x70] sm:$0xff]
    %v36 = vld [vmem:[%s0 + $0x78] sm:$0xff]
    %v37 = vld [vmem:[%s0 + $0x80] sm:$0xff]
    %v38 = vld [vmem:[%s0 + $0x88] sm:$0xff]
    %v39 = vld [vmem:[%s0 + $0x90] sm:$0xff]
    %v40 = vld [vmem:[%s0 + $0x98] sm:$0xff]
    %v41 = vld [vmem:[%s0 + $0xa0] sm:$0xff]
    %v42 = vld [vmem:[%s0 + $0xa8] sm:$0xff]
    %v43 = vld [vmem:[%s0 + $0xb0] sm:$0xff]
    %v44 = vld [vmem:[%s0 + $0xb8] sm:$0xff]
    %v45 = vld [vmem:[%s0 + $0xc0] sm:$0xff]
    %v46 = vld [vmem:[%s0 + $0xc8] sm:$0xff]
    %v47 = vld [vmem:[%s0 + $0xd0] sm:$0xff]
    %v48 = vld [vmem:[%s0 + $0xd8] sm:$0xff]
    %v49 = vld [vmem:[%s0 + $0xe0] sm:$0xff]
    %v50 = vld [vmem:[%s0 + $0xe8] sm:$0xff]
    %v51 = vld [vmem:[%s0 + $0xf0] sm:$0xff]
    %v52 = vld [vmem:[%s0 + $0xf8] sm:$0xff]
    %v53 = vld [vmem:[%s1] sm:$0xff]
    %v54 = vld [vmem:[%s1 + $0x8] sm:$0xff]
    %v55 = vld [vmem:[%s1 + $0x10] sm:$0xff]
    %v56 = vld [vmem:[%s1 + $0x18] sm:$0xff]
    %v57 = vld [vmem:[%s2] sm:$0x1]
    %v59 = vlaneseq
    %v60 = vshrl.u32 %v59, 7
    %v61 = vsub.s32 0, %v60
    %v62 = vrot.slane %v57, %v61
    %vm64 = vcmask 261120
    %v66 = vsel %vm64, %v21, 0
    %v69 = vsel %vm64, %v22, 0
    %v72 = vsel %vm64, %v23, 0
    %v75 = vsel %vm64, %v24, 0
    %v78 = vsel %vm64, %v25, 0
    %v81 = vsel %vm64, %v26, 0
    %v84 = vsel %vm64, %v27, 0
    %v87 = vsel %vm64, %v28, 0
    %v90 = vsel %vm64, %v29, 0
    %v93 = vsel %vm64, %v30, 0
    %v96 = vsel %vm64, %v31, 0
    %v99 = vsel %vm64, %v32, 0
    %v102 = vsel %vm64, %v33, 0
    %v105 = vsel %vm64, %v34, 0
    %v108 = vsel %vm64, %v35, 0
    %v111 = vsel %vm64, %v36, 0
    %v114 = vsel %vm64, %v37, 0
    %v117 = vsel %vm64, %v38, 0
    %v120 = vsel %vm64, %v39, 0
    %v123 = vsel %vm64, %v40, 0
    %v126 = vsel %vm64, %v41, 0
    %v129 = vsel %vm64, %v42, 0
    %v132 = vsel %vm64, %v43, 0
    %v135 = vsel %vm64, %v44, 0
    %v138 = vsel %vm64, %v45, 0
    %v141 = vsel %vm64, %v46, 0
    %v144 = vsel %vm64, %v47, 0
    %v147 = vsel %vm64, %v48, 0
    %v150 = vsel %vm64, %v49, 0
    %v153 = vsel %vm64, %v50, 0
    %v156 = vsel %vm64, %v51, 0
    %v159 = vsel %vm64, %v52, 0
    %161 = vmatprep.subr.mxu0 0.0
    %162 = vmatpush1.msra.mxu0 %v53
    %163 = vmatprep.subr.mxu0 0.0
    %164 = vmatpush1.msra.mxu0 %v54
    %165 = vmatprep.subr.mxu0 0.0
    %166 = vmatpush1.msra.mxu0 %v55
    %167 = vmatprep.subr.mxu0 0.0
    %168 = vmatpush1.msra.mxu0 %v56
    %169 = vmatprep.subr.mxu0 0.0
    %170 = vmatpush1.msra.mxu0 0.0
    %171 = vmatprep.subr.mxu0 0.0
    %172 = vmatpush1.msra.mxu0 0.0
    %173 = vmatprep.subr.mxu0 0.0
    %174 = vmatpush1.msra.mxu0 0.0
    %175 = vmatprep.subr.mxu0 0.0
    %176 = vmatpush1.msra.mxu0 0.0
    %177 = vmatprep.subr.mxu0 0.0
    %178 = vmatpush1.msra.mxu0 0.0
    %179 = vmatprep.subr.mxu0 0.0
    %180 = vmatpush1.msra.mxu0 0.0
    %181 = vmatprep.subr.mxu0 0.0
    %182 = vmatpush1.msra.mxu0 0.0
    %183 = vmatprep.subr.mxu0 0.0
    %184 = vmatpush1.msra.mxu0 0.0
    %185 = vmatprep.subr.mxu0 0.0
    %186 = vmatpush1.msra.mxu0 0.0
    %187 = vmatprep.subr.mxu0 0.0
    %188 = vmatpush1.msra.mxu0 0.0
    %189 = vmatprep.subr.mxu0 0.0
    %190 = vmatpush1.msra.mxu0 0.0
    %191 = vmatprep.subr.mxu0 0.0
    %192 = vmatpush1.msra.mxu0 0.0
    %193 = vmatprep.subr.mxu0 0.0
    %194 = vmatpush1.msra.mxu0 0.0
    %195 = vmatprep.subr.mxu0 0.0
    %196 = vmatpush1.msra.mxu0 0.0
    %197 = vmatprep.subr.mxu0 0.0
    %198 = vmatpush1.msra.mxu0 0.0
    %199 = vmatprep.subr.mxu0 0.0
    %200 = vmatpush1.msra.mxu0 0.0
    %201 = vmatprep.subr.mxu0 0.0
    %202 = vmatpush1.msra.mxu0 0.0
    %203 = vmatprep.subr.mxu0 0.0
    %204 = vmatpush1.msra.mxu0 0.0
    %205 = vmatprep.subr.mxu0 0.0
    %206 = vmatpush1.msra.mxu0 0.0
    %207 = vmatprep.subr.mxu0 0.0
    %208 = vmatpush1.msra.mxu0 0.0
    %209 = vmatprep.subr.mxu0 0.0
    %210 = vmatpush1.msra.mxu0 0.0
    %211 = vmatprep.subr.mxu0 0.0
    %212 = vmatpush1.msra.mxu0 0.0
    %213 = vmatprep.subr.mxu0 0.0
    %214 = vmatpush1.msra.mxu0 0.0
    %215 = vmatprep.subr.mxu0 0.0
    %216 = vmatpush1.msra.mxu0 0.0
    %217 = vmatprep.subr.mxu0 0.0
    %218 = vmatpush1.msra.mxu0 0.0
    %219 = vmatprep.subr.mxu0 0.0
    %220 = vmatpush1.msra.mxu0 0.0
    %221 = vmatprep.subr.mxu0 0.0
    %222 = vmatpush1.msra.mxu0 0.0
    %223 = vmatprep.subr.mxu0 0.0
    %224 = vmatpush1.msra.mxu0 0.0
    %225 = vmatprep.mubr.f32.mxu0 0.0
    %226 = vmatmul.mubr.f32.gmra.mrb[0].mxu0 %v66
    %v227 = vpop.f32.mrb[0].mxu0
    %v228 = vadd.f32 %v62, %v227
    %v229 = vpop.f32.mrb[0].mxu0
    %230 = vmatprep.mubr.f32.mxu0 0.0
    %231 = vmatmul.mubr.f32.gmra.mrb[0].mxu0 %v69
    %v232 = vpop.f32.mrb[0].mxu0
    %v233 = vadd.f32 %v62, %v232
    %v234 = vpop.f32.mrb[0].mxu0
    %235 = vmatprep.mubr.f32.mxu0 0.0
    %236 = vmatmul.mubr.f32.gmra.mrb[0].mxu0 %v72
    %v237 = vpop.f32.mrb[0].mxu0
    %v238 = vadd.f32 %v62, %v237
    %v239 = vpop.f32.mrb[0].mxu0
    %240 = vmatprep.mubr.f32.mxu0 0.0
    %241 = vmatmul.mubr.f32.gmra.mrb[0].mxu0 %v75
    %v242 = vpop.f32.mrb[0].mxu0
    %v243 = vadd.f32 %v62, %v242
    %v244 = vpop.f32.mrb[0].mxu0
    %245 = vmatprep.mubr.f32.mxu0 0.0
    %246 = vmatmul.mubr.f32.gmra.mrb[0].mxu0 %v78
    %v247 = vpop.f32.mrb[0].mxu0
    %v248 = vadd.f32 %v62, %v247
    %v249 = vpop.f32.mrb[0].mxu0
    %250 = vmatprep.mubr.f32.mxu0 0.0
    %251 = vmatmul.mubr.f32.gmra.mrb[0].mxu0 %v81
    %v252 = vpop.f32.mrb[0].mxu0
    %v253 = vadd.f32 %v62, %v252
    %v254 = vpop.f32.mrb[0].mxu0
    %255 = vmatprep.mubr.f32.mxu0 0.0
    %256 = vmatmul.mubr.f32.gmra.mrb[0].mxu0 %v84
    %v257 = vpop.f32.mrb[0].mxu0
    %v258 = vadd.f32 %v62, %v257
    %v259 = vpop.f32.mrb[0].mxu0
    %260 = vmatprep.mubr.f32.mxu0 0.0
    %261 = vmatmul.mubr.f32.gmra.mrb[0].mxu0 %v87
    %v262 = vpop.f32.mrb[0].mxu0
    %v263 = vadd.f32 %v62, %v262
    %v264 = vpop.f32.mrb[0].mxu0
    %265 = vmatprep.mubr.f32.mxu0 0.0
    %266 = vmatmul.mubr.f32.gmra.mrb[0].mxu0 %v90
    %v267 = vpop.f32.mrb[0].mxu0
    %v268 = vadd.f32 %v62, %v267
    %v269 = vpop.f32.mrb[0].mxu0
    %270 = vmatprep.mubr.f32.mxu0 0.0
    %271 = vmatmul.mubr.f32.gmra.mrb[0].mxu0 %v93
    %v272 = vpop.f32.mrb[0].mxu0
    %v273 = vadd.f32 %v62, %v272
    %v274 = vpop.f32.mrb[0].mxu0
    %275 = vmatprep.mubr.f32.mxu0 0.0
    %276 = vmatmul.mubr.f32.gmra.mrb[0].mxu0 %v96
    %v277 = vpop.f32.mrb[0].mxu0
    %v278 = vadd.f32 %v62, %v277
    %v279 = vpop.f32.mrb[0].mxu0
    %280 = vmatprep.mubr.f32.mxu0 0.0
    %281 = vmatmul.mubr.f32.gmra.mrb[0].mxu0 %v99
    %v282 = vpop.f32.mrb[0].mxu0
    %v283 = vadd.f32 %v62, %v282
    %v284 = vpop.f32.mrb[0].mxu0
    %285 = vmatprep.mubr.f32.mxu0 0.0
    %286 = vmatmul.mubr.f32.gmra.mrb[0].mxu0 %v102
    %v287 = vpop.f32.mrb[0].mxu0
    %v288 = vadd.f32 %v62, %v287
    %v289 = vpop.f32.mrb[0].mxu0
    %290 = vmatprep.mubr.f32.mxu0 0.0
    %291 = vmatmul.mubr.f32.gmra.mrb[0].mxu0 %v105
    %v292 = vpop.f32.mrb[0].mxu0
    %v293 = vadd.f32 %v62, %v292
    %v294 = vpop.f32.mrb[0].mxu0
    %295 = vmatprep.mubr.f32.mxu0 0.0
    %296 = vmatmul.mubr.f32.gmra.mrb[0].mxu0 %v108
    %v297 = vpop.f32.mrb[0].mxu0
    %v298 = vadd.f32 %v62, %v297
    %v299 = vpop.f32.mrb[0].mxu0
    %300 = vmatprep.mubr.f32.mxu0 0.0
    %301 = vmatmul.mubr.f32.gmra.mrb[0].mxu0 %v111
    %v302 = vpop.f32.mrb[0].mxu0
    %v303 = vadd.f32 %v62, %v302
    %v304 = vpop.f32.mrb[0].mxu0
    %305 = vmatprep.mubr.f32.mxu0 0.0
    %306 = vmatmul.mubr.f32.gmra.mrb[0].mxu0 %v114
    %v307 = vpop.f32.mrb[0].mxu0
    %v308 = vadd.f32 %v62, %v307
    %v309 = vpop.f32.mrb[0].mxu0
    %310 = vmatprep.mubr.f32.mxu0 0.0
    %311 = vmatmul.mubr.f32.gmra.mrb[0].mxu0 %v117
    %v312 = vpop.f32.mrb[0].mxu0
    %v313 = vadd.f32 %v62, %v312
    %v314 = vpop.f32.mrb[0].mxu0
    %315 = vmatprep.mubr.f32.mxu0 0.0
    %316 = vmatmul.mubr.f32.gmra.mrb[0].mxu0 %v120
    %v317 = vpop.f32.mrb[0].mxu0
    %v318 = vadd.f32 %v62, %v317
    %v319 = vpop.f32.mrb[0].mxu0
    %320 = vmatprep.mubr.f32.mxu0 0.0
    %321 = vmatmul.mubr.f32.gmra.mrb[0].mxu0 %v123
    %v322 = vpop.f32.mrb[0].mxu0
    %v323 = vadd.f32 %v62, %v322
    %v324 = vpop.f32.mrb[0].mxu0
    %325 = vmatprep.mubr.f32.mxu0 0.0
    %326 = vmatmul.mubr.f32.gmra.mrb[0].mxu0 %v126
    %v327 = vpop.f32.mrb[0].mxu0
    %v328 = vadd.f32 %v62, %v327
    %v329 = vpop.f32.mrb[0].mxu0
    %330 = vmatprep.mubr.f32.mxu0 0.0
    %331 = vmatmul.mubr.f32.gmra.mrb[0].mxu0 %v129
    %v332 = vpop.f32.mrb[0].mxu0
    %v333 = vadd.f32 %v62, %v332
    %v334 = vpop.f32.mrb[0].mxu0
    %335 = vmatprep.mubr.f32.mxu0 0.0
    %336 = vmatmul.mubr.f32.gmra.mrb[0].mxu0 %v132
    %v337 = vpop.f32.mrb[0].mxu0
    %v338 = vadd.f32 %v62, %v337
    %v339 = vpop.f32.mrb[0].mxu0
    %340 = vmatprep.mubr.f32.mxu0 0.0
    %341 = vmatmul.mubr.f32.gmra.mrb[0].mxu0 %v135
    %v342 = vpop.f32.mrb[0].mxu0
    %v343 = vadd.f32 %v62, %v342
    %v344 = vpop.f32.mrb[0].mxu0
    %345 = vmatprep.mubr.f32.mxu0 0.0
    %346 = vmatmul.mubr.f32.gmra.mrb[0].mxu0 %v138
    %v347 = vpop.f32.mrb[0].mxu0
    %v348 = vadd.f32 %v62, %v347
    %v349 = vpop.f32.mrb[0].mxu0
    %350 = vmatprep.mubr.f32.mxu0 0.0
    %351 = vmatmul.mubr.f32.gmra.mrb[0].mxu0 %v141
    %v352 = vpop.f32.mrb[0].mxu0
    %v353 = vadd.f32 %v62, %v352
    %v354 = vpop.f32.mrb[0].mxu0
    %355 = vmatprep.mubr.f32.mxu0 0.0
    %356 = vmatmul.mubr.f32.gmra.mrb[0].mxu0 %v144
    %v357 = vpop.f32.mrb[0].mxu0
    %v358 = vadd.f32 %v62, %v357
    %v359 = vpop.f32.mrb[0].mxu0
    %360 = vmatprep.mubr.f32.mxu0 0.0
    %361 = vmatmul.mubr.f32.gmra.mrb[0].mxu0 %v147
    %v362 = vpop.f32.mrb[0].mxu0
    %v363 = vadd.f32 %v62, %v362
    %v364 = vpop.f32.mrb[0].mxu0
    %365 = vmatprep.mubr.f32.mxu0 0.0
    %366 = vmatmul.mubr.f32.gmra.mrb[0].mxu0 %v150
    %v367 = vpop.f32.mrb[0].mxu0
    %v368 = vadd.f32 %v62, %v367
    %v369 = vpop.f32.mrb[0].mxu0
    %370 = vmatprep.mubr.f32.mxu0 0.0
    %371 = vmatmul.mubr.f32.gmra.mrb[0].mxu0 %v153
    %v372 = vpop.f32.mrb[0].mxu0
    %v373 = vadd.f32 %v62, %v372
    %v374 = vpop.f32.mrb[0].mxu0
    %375 = vmatprep.mubr.f32.mxu0 0.0
    %376 = vmatmul.mubr.f32.gmra.mrb[0].mxu0 %v156
    %v377 = vpop.f32.mrb[0].mxu0
    %v378 = vadd.f32 %v62, %v377
    %v379 = vpop.f32.mrb[0].mxu0
    %380 = vmatprep.mubr.f32.mxu0 0.0
    %381 = vmatmul.mubr.f32.gmra.mrb[0].mxu0 %v159
    %v382 = vpop.f32.mrb[0].mxu0
    %v383 = vadd.f32 %v62, %v382
    %v384 = vpop.f32.mrb[0].mxu0
    %385 = vdwg.mxu0
    %v386 = vmax.f32 %v228, 0.0
    %v387 = vmax.f32 %v233, 0.0
    %v388 = vmax.f32 %v238, 0.0
    %v389 = vmax.f32 %v243, 0.0
    %v390 = vmax.f32 %v248, 0.0
    %v391 = vmax.f32 %v253, 0.0
    %v392 = vmax.f32 %v258, 0.0
    %v393 = vmax.f32 %v263, 0.0
    %v394 = vmax.f32 %v268, 0.0
    %v395 = vmax.f32 %v273, 0.0
    %v396 = vmax.f32 %v278, 0.0
    %v397 = vmax.f32 %v283, 0.0
    %v398 = vmax.f32 %v288, 0.0
    %v399 = vmax.f32 %v293, 0.0
    %v400 = vmax.f32 %v298, 0.0
    %v401 = vmax.f32 %v303, 0.0
    %v402 = vmax.f32 %v308, 0.0
    %v403 = vmax.f32 %v313, 0.0
    %v404 = vmax.f32 %v318, 0.0
    %v405 = vmax.f32 %v323, 0.0
    %v406 = vmax.f32 %v328, 0.0
    %v407 = vmax.f32 %v333, 0.0
    %v408 = vmax.f32 %v338, 0.0
    %v409 = vmax.f32 %v343, 0.0
    %v410 = vmax.f32 %v348, 0.0
    %v411 = vmax.f32 %v353, 0.0
    %v412 = vmax.f32 %v358, 0.0
    %v413 = vmax.f32 %v363, 0.0
    %v414 = vmax.f32 %v368, 0.0
    %v415 = vmax.f32 %v373, 0.0
    %v416 = vmax.f32 %v378, 0.0
    %v417 = vmax.f32 %v383, 0.0
    %v418 = vld [vmem:[%s3] sm:$0xff]
    %v419 = vld [vmem:[%s3 + $0x8] sm:$0xff]
    %v420 = vld [vmem:[%s3 + $0x10] sm:$0xff]
    %v421 = vld [vmem:[%s3 + $0x18] sm:$0xff]
    %v422 = vld [vmem:[%s4] sm:$0x1]
    %v424 = vlaneseq
    %v425 = vshrl.u32 %v424, 7
    %v426 = vsub.s32 0, %v425
    %v427 = vrot.slane %v422, %v426
    %v430 = vsel %vm64, %v386, 0
    %v433 = vsel %vm64, %v387, 0
    %v436 = vsel %vm64, %v388, 0
    %v439 = vsel %vm64, %v389, 0
    %v442 = vsel %vm64, %v390, 0
    %v445 = vsel %vm64, %v391, 0
    %v448 = vsel %vm64, %v392, 0
    %v451 = vsel %vm64, %v393, 0
    %v454 = vsel %vm64, %v394, 0
    %v457 = vsel %vm64, %v395, 0
    %v460 = vsel %vm64, %v396, 0
    %v463 = vsel %vm64, %v397, 0
    %v466 = vsel %vm64, %v398, 0
    %v469 = vsel %vm64, %v399, 0
    %v472 = vsel %vm64, %v400, 0
    %v475 = vsel %vm64, %v401, 0
    %v478 = vsel %vm64, %v402, 0
    %v481 = vsel %vm64, %v403, 0
    %v484 = vsel %vm64, %v404, 0
    %v487 = vsel %vm64, %v405, 0
    %v490 = vsel %vm64, %v406, 0
    %v493 = vsel %vm64, %v407, 0
    %v496 = vsel %vm64, %v408, 0
    %v499 = vsel %vm64, %v409, 0
    %v502 = vsel %vm64, %v410, 0
    %v505 = vsel %vm64, %v411, 0
    %v508 = vsel %vm64, %v412, 0
    %v511 = vsel %vm64, %v413, 0
    %v514 = vsel %vm64, %v414, 0
    %v517 = vsel %vm64, %v415, 0
    %v520 = vsel %vm64, %v416, 0
    %v523 = vsel %vm64, %v417, 0
    %525 = vmatprep.subr.mxu0 0.0
    %526 = vmatpush1.msra.mxu0 %v418
    %527 = vmatprep.subr.mxu0 0.0
    %528 = vmatpush1.msra.mxu0 %v419
    %529 = vmatprep.subr.mxu0 0.0
    %530 = vmatpush1.msra.mxu0 %v420
    %531 = vmatprep.subr.mxu0 0.0
    %532 = vmatpush1.msra.mxu0 %v421
    %533 = vmatprep.subr.mxu0 0.0
    %534 = vmatpush1.msra.mxu0 0.0
    %535 = vmatprep.subr.mxu0 0.0
    %536 = vmatpush1.msra.mxu0 0.0
    %537 = vmatprep.subr.mxu0 0.0
    %538 = vmatpush1.msra.mxu0 0.0
    %539 = vmatprep.subr.mxu0 0.0
    %540 = vmatpush1.msra.mxu0 0.0
    %541 = vmatprep.subr.mxu0 0.0
    %542 = vmatpush1.msra.mxu0 0.0
    %543 = vmatprep.subr.mxu0 0.0
    %544 = vmatpush1.msra.mxu0 0.0
    %545 = vmatprep.subr.mxu0 0.0
    %546 = vmatpush1.msra.mxu0 0.0
    %547 = vmatprep.subr.mxu0 0.0
    %548 = vmatpush1.msra.mxu0 0.0
    %549 = vmatprep.subr.mxu0 0.0
    %550 = vmatpush1.msra.mxu0 0.0
    %551 = vmatprep.subr.mxu0 0.0
    %552 = vmatpush1.msra.mxu0 0.0
    %553 = vmatprep.subr.mxu0 0.0
    %554 = vmatpush1.msra.mxu0 0.0
    %555 = vmatprep.subr.mxu0 0.0
    %556 = vmatpush1.msra.mxu0 0.0
    %557 = vmatprep.subr.mxu0 0.0
    %558 = vmatpush1.msra.mxu0 0.0
    %559 = vmatprep.subr.mxu0 0.0
    %560 = vmatpush1.msra.mxu0 0.0
    %561 = vmatprep.subr.mxu0 0.0
    %562 = vmatpush1.msra.mxu0 0.0
    %563 = vmatprep.subr.mxu0 0.0
    %564 = vmatpush1.msra.mxu0 0.0
    %565 = vmatprep.subr.mxu0 0.0
    %566 = vmatpush1.msra.mxu0 0.0
    %567 = vmatprep.subr.mxu0 0.0
    %568 = vmatpush1.msra.mxu0 0.0
    %569 = vmatprep.subr.mxu0 0.0
    %570 = vmatpush1.msra.mxu0 0.0
    %571 = vmatprep.subr.mxu0 0.0
    %572 = vmatpush1.msra.mxu0 0.0
    %573 = vmatprep.subr.mxu0 0.0
    %574 = vmatpush1.msra.mxu0 0.0
    %575 = vmatprep.subr.mxu0 0.0
    %576 = vmatpush1.msra.mxu0 0.0
    %577 = vmatprep.subr.mxu0 0.0
    %578 = vmatpush1.msra.mxu0 0.0
    %579 = vmatprep.subr.mxu0 0.0
    %580 = vmatpush1.msra.mxu0 0.0
    %581 = vmatprep.subr.mxu0 0.0
    %582 = vmatpush1.msra.mxu0 0.0
    %583 = vmatprep.subr.mxu0 0.0
    %584 = vmatpush1.msra.mxu0 0.0
    %585 = vmatprep.subr.mxu0 0.0
    %586 = vmatpush1.msra.mxu0 0.0
    %587 = vmatprep.subr.mxu0 0.0
    %588 = vmatpush1.msra.mxu0 0.0
    %589 = vmatprep.mubr.f32.mxu0 0.0
    %590 = vmatmul.mubr.f32.gmra.mrb[0].mxu0 %v430
    %v591 = vpop.f32.mrb[0].mxu0
    %v592 = vadd.f32 %v427, %v591
    %v593 = vpop.f32.mrb[0].mxu0
    %594 = vmatprep.mubr.f32.mxu0 0.0
    %595 = vmatmul.mubr.f32.gmra.mrb[0].mxu0 %v433
    %v596 = vpop.f32.mrb[0].mxu0
    %v597 = vadd.f32 %v427, %v596
    %v598 = vpop.f32.mrb[0].mxu0
    %599 = vmatprep.mubr.f32.mxu0 0.0
    %600 = vmatmul.mubr.f32.gmra.mrb[0].mxu0 %v436
    %v601 = vpop.f32.mrb[0].mxu0
    %v602 = vadd.f32 %v427, %v601
    %v603 = vpop.f32.mrb[0].mxu0
    %604 = vmatprep.mubr.f32.mxu0 0.0
    %605 = vmatmul.mubr.f32.gmra.mrb[0].mxu0 %v439
    %v606 = vpop.f32.mrb[0].mxu0
    %v607 = vadd.f32 %v427, %v606
    %v608 = vpop.f32.mrb[0].mxu0
    %609 = vmatprep.mubr.f32.mxu0 0.0
    %610 = vmatmul.mubr.f32.gmra.mrb[0].mxu0 %v442
    %v611 = vpop.f32.mrb[0].mxu0
    %v612 = vadd.f32 %v427, %v611
    %v613 = vpop.f32.mrb[0].mxu0
    %614 = vmatprep.mubr.f32.mxu0 0.0
    %615 = vmatmul.mubr.f32.gmra.mrb[0].mxu0 %v445
    %v616 = vpop.f32.mrb[0].mxu0
    %v617 = vadd.f32 %v427, %v616
    %v618 = vpop.f32.mrb[0].mxu0
    %619 = vmatprep.mubr.f32.mxu0 0.0
    %620 = vmatmul.mubr.f32.gmra.mrb[0].mxu0 %v448
    %v621 = vpop.f32.mrb[0].mxu0
    %v622 = vadd.f32 %v427, %v621
    %v623 = vpop.f32.mrb[0].mxu0
    %624 = vmatprep.mubr.f32.mxu0 0.0
    %625 = vmatmul.mubr.f32.gmra.mrb[0].mxu0 %v451
    %v626 = vpop.f32.mrb[0].mxu0
    %v627 = vadd.f32 %v427, %v626
    %v628 = vpop.f32.mrb[0].mxu0
    %629 = vmatprep.mubr.f32.mxu0 0.0
    %630 = vmatmul.mubr.f32.gmra.mrb[0].mxu0 %v454
    %v631 = vpop.f32.mrb[0].mxu0
    %v632 = vadd.f32 %v427, %v631
    %v633 = vpop.f32.mrb[0].mxu0
    %634 = vmatprep.mubr.f32.mxu0 0.0
    %635 = vmatmul.mubr.f32.gmra.mrb[0].mxu0 %v457
    %v636 = vpop.f32.mrb[0].mxu0
    %v637 = vadd.f32 %v427, %v636
    %v638 = vpop.f32.mrb[0].mxu0
    %639 = vmatprep.mubr.f32.mxu0 0.0
    %640 = vmatmul.mubr.f32.gmra.mrb[0].mxu0 %v460
    %v641 = vpop.f32.mrb[0].mxu0
    %v642 = vadd.f32 %v427, %v641
    %v643 = vpop.f32.mrb[0].mxu0
    %644 = vmatprep.mubr.f32.mxu0 0.0
    %645 = vmatmul.mubr.f32.gmra.mrb[0].mxu0 %v463
    %v646 = vpop.f32.mrb[0].mxu0
    %v647 = vadd.f32 %v427, %v646
    %v648 = vpop.f32.mrb[0].mxu0
    %649 = vmatprep.mubr.f32.mxu0 0.0
    %650 = vmatmul.mubr.f32.gmra.mrb[0].mxu0 %v466
    %v651 = vpop.f32.mrb[0].mxu0
    %v652 = vadd.f32 %v427, %v651
    %v653 = vpop.f32.mrb[0].mxu0
    %654 = vmatprep.mubr.f32.mxu0 0.0
    %655 = vmatmul.mubr.f32.gmra.mrb[0].mxu0 %v469
    %v656 = vpop.f32.mrb[0].mxu0
    %v657 = vadd.f32 %v427, %v656
    %v658 = vpop.f32.mrb[0].mxu0
    %659 = vmatprep.mubr.f32.mxu0 0.0
    %660 = vmatmul.mubr.f32.gmra.mrb[0].mxu0 %v472
    %v661 = vpop.f32.mrb[0].mxu0
    %v662 = vadd.f32 %v427, %v661
    %v663 = vpop.f32.mrb[0].mxu0
    %664 = vmatprep.mubr.f32.mxu0 0.0
    %665 = vmatmul.mubr.f32.gmra.mrb[0].mxu0 %v475
    %v666 = vpop.f32.mrb[0].mxu0
    %v667 = vadd.f32 %v427, %v666
    %v668 = vpop.f32.mrb[0].mxu0
    %669 = vmatprep.mubr.f32.mxu0 0.0
    %670 = vmatmul.mubr.f32.gmra.mrb[0].mxu0 %v478
    %v671 = vpop.f32.mrb[0].mxu0
    %v672 = vadd.f32 %v427, %v671
    %v673 = vpop.f32.mrb[0].mxu0
    %674 = vmatprep.mubr.f32.mxu0 0.0
    %675 = vmatmul.mubr.f32.gmra.mrb[0].mxu0 %v481
    %v676 = vpop.f32.mrb[0].mxu0
    %v677 = vadd.f32 %v427, %v676
    %v678 = vpop.f32.mrb[0].mxu0
    %679 = vmatprep.mubr.f32.mxu0 0.0
    %680 = vmatmul.mubr.f32.gmra.mrb[0].mxu0 %v484
    %v681 = vpop.f32.mrb[0].mxu0
    %v682 = vadd.f32 %v427, %v681
    %v683 = vpop.f32.mrb[0].mxu0
    %684 = vmatprep.mubr.f32.mxu0 0.0
    %685 = vmatmul.mubr.f32.gmra.mrb[0].mxu0 %v487
    %v686 = vpop.f32.mrb[0].mxu0
    %v687 = vadd.f32 %v427, %v686
    %v688 = vpop.f32.mrb[0].mxu0
    %689 = vmatprep.mubr.f32.mxu0 0.0
    %690 = vmatmul.mubr.f32.gmra.mrb[0].mxu0 %v490
    %v691 = vpop.f32.mrb[0].mxu0
    %v692 = vadd.f32 %v427, %v691
    %v693 = vpop.f32.mrb[0].mxu0
    %694 = vmatprep.mubr.f32.mxu0 0.0
    %695 = vmatmul.mubr.f32.gmra.mrb[0].mxu0 %v493
    %v696 = vpop.f32.mrb[0].mxu0
    %v697 = vadd.f32 %v427, %v696
    %v698 = vpop.f32.mrb[0].mxu0
    %699 = vmatprep.mubr.f32.mxu0 0.0
    %700 = vmatmul.mubr.f32.gmra.mrb[0].mxu0 %v496
    %v701 = vpop.f32.mrb[0].mxu0
    %v702 = vadd.f32 %v427, %v701
    %v703 = vpop.f32.mrb[0].mxu0
    %704 = vmatprep.mubr.f32.mxu0 0.0
    %705 = vmatmul.mubr.f32.gmra.mrb[0].mxu0 %v499
    %v706 = vpop.f32.mrb[0].mxu0
    %v707 = vadd.f32 %v427, %v706
    %v708 = vpop.f32.mrb[0].mxu0
    %709 = vmatprep.mubr.f32.mxu0 0.0
    %710 = vmatmul.mubr.f32.gmra.mrb[0].mxu0 %v502
    %v711 = vpop.f32.mrb[0].mxu0
    %v712 = vadd.f32 %v427, %v711
    %v713 = vpop.f32.mrb[0].mxu0
    %714 = vmatprep.mubr.f32.mxu0 0.0
    %715 = vmatmul.mubr.f32.gmra.mrb[0].mxu0 %v505
    %v716 = vpop.f32.mrb[0].mxu0
    %v717 = vadd.f32 %v427, %v716
    %v718 = vpop.f32.mrb[0].mxu0
    %719 = vmatprep.mubr.f32.mxu0 0.0
    %720 = vmatmul.mubr.f32.gmra.mrb[0].mxu0 %v508
    %v721 = vpop.f32.mrb[0].mxu0
    %v722 = vadd.f32 %v427, %v721
    %v723 = vpop.f32.mrb[0].mxu0
    %724 = vmatprep.mubr.f32.mxu0 0.0
    %725 = vmatmul.mubr.f32.gmra.mrb[0].mxu0 %v511
    %v726 = vpop.f32.mrb[0].mxu0
    %v727 = vadd.f32 %v427, %v726
    %v728 = vpop.f32.mrb[0].mxu0
    %729 = vmatprep.mubr.f32.mxu0 0.0
    %730 = vmatmul.mubr.f32.gmra.mrb[0].mxu0 %v514
    %v731 = vpop.f32.mrb[0].mxu0
    %v732 = vadd.f32 %v427, %v731
    %v733 = vpop.f32.mrb[0].mxu0
    %734 = vmatprep.mubr.f32.mxu0 0.0
    %735 = vmatmul.mubr.f32.gmra.mrb[0].mxu0 %v517
    %v736 = vpop.f32.mrb[0].mxu0
    %v737 = vadd.f32 %v427, %v736
    %v738 = vpop.f32.mrb[0].mxu0
    %739 = vmatprep.mubr.f32.mxu0 0.0
    %740 = vmatmul.mubr.f32.gmra.mrb[0].mxu0 %v520
    %v741 = vpop.f32.mrb[0].mxu0
    %v742 = vadd.f32 %v427, %v741
    %v743 = vpop.f32.mrb[0].mxu0
    %744 = vmatprep.mubr.f32.mxu0 0.0
    %745 = vmatmul.mubr.f32.gmra.mrb[0].mxu0 %v523
    %v746 = vpop.f32.mrb[0].mxu0
    %v747 = vadd.f32 %v427, %v746
    %v748 = vpop.f32.mrb[0].mxu0
    %749 = vdwg.mxu0
    %750 = vst [vmem:[#allocation2] sm:$0xff] %v592
    %751 = vst [vmem:[#allocation2 + $0x8] sm:$0xff] %v597
    %752 = vst [vmem:[#allocation2 + $0x10] sm:$0xff] %v602
    %753 = vst [vmem:[#allocation2 + $0x18] sm:$0xff] %v607
    %754 = vst [vmem:[#allocation2 + $0x20] sm:$0xff] %v612
    %755 = vst [vmem:[#allocation2 + $0x28] sm:$0xff] %v617
    %756 = vst [vmem:[#allocation2 + $0x30] sm:$0xff] %v622
    %757 = vst [vmem:[#allocation2 + $0x38] sm:$0xff] %v627
    %758 = vst [vmem:[#allocation2 + $0x40] sm:$0xff] %v632
    %759 = vst [vmem:[#allocation2 + $0x48] sm:$0xff] %v637
    %760 = vst [vmem:[#allocation2 + $0x50] sm:$0xff] %v642
    %761 = vst [vmem:[#allocation2 + $0x58] sm:$0xff] %v647
    %762 = vst [vmem:[#allocation2 + $0x60] sm:$0xff] %v652
    %763 = vst [vmem:[#allocation2 + $0x68] sm:$0xff] %v657
    %764 = vst [vmem:[#allocation2 + $0x70] sm:$0xff] %v662
    %765 = vst [vmem:[#allocation2 + $0x78] sm:$0xff] %v667
    %766 = vst [vmem:[#allocation2 + $0x80] sm:$0xff] %v672
    %767 = vst [vmem:[#allocation2 + $0x88] sm:$0xff] %v677
    %768 = vst [vmem:[#allocation2 + $0x90] sm:$0xff] %v682
    %769 = vst [vmem:[#allocation2 + $0x98] sm:$0xff] %v687
    %770 = vst [vmem:[#allocation2 + $0xa0] sm:$0xff] %v692
    %771 = vst [vmem:[#allocation2 + $0xa8] sm:$0xff] %v697
    %772 = vst [vmem:[#allocation2 + $0xb0] sm:$0xff] %v702
    %773 = vst [vmem:[#allocation2 + $0xb8] sm:$0xff] %v707
    %774 = vst [vmem:[#allocation2 + $0xc0] sm:$0xff] %v712
    %775 = vst [vmem:[#allocation2 + $0xc8] sm:$0xff] %v717
    %776 = vst [vmem:[#allocation2 + $0xd0] sm:$0xff] %v722
    %777 = vst [vmem:[#allocation2 + $0xd8] sm:$0xff] %v727
    %778 = vst [vmem:[#allocation2 + $0xe0] sm:$0xff] %v732
    %779 = vst [vmem:[#allocation2 + $0xe8] sm:$0xff] %v737
    %780 = vst [vmem:[#allocation2 + $0xf0] sm:$0xff] %v742
    %781 = vst [vmem:[#allocation2 + $0xf8] sm:$0xff] %v747
    // Predicated region
    $region22: #{tpu_custom_call.1} parent=1 // pred_check
      _
    $region23: #{tpu_custom_call.1} parent=1 // pred_check_branch
      %783 = sbr.rel (0) target = $region25
    $region24: #{tpu_custom_call.1} parent=1 // pred_region
      %s785 = ssub.s32 4096, 4096
      %786 = vsyncadd [#allocation3], %s785
      %s787 = sshll.u32 [#allocation2], 4
      %s788 = int_to_ptr.vmem [resolvable:$true] %s787
      %793 = dma.vmem_to_hbm [thread:$0]  %s788, 4096, %s5, [#allocation3], 128, 128, 8
    $region25: #{tpu_custom_call.1} parent=1 // pred_fallthru
      _
    // Predicated region
    $region26: #{tpu_custom_call.1} parent=1 // pred_check
      _
    $region27: #{tpu_custom_call.1} parent=1 // pred_check_branch
      %795 = sbr.rel (0) target = $region29
    $region28: #{tpu_custom_call.1} parent=1 // pred_region
      %796 = dma.done [#allocation3], 4096
    $region29: #{tpu_custom_call.1} parent=1 // pred_fallthru
      _
    %797 = vsyncpa [#allocation3], 1

</llo_original>
